<compile_context>
chip_gen: v7x
topology: tpu7x:2x2x1
jax: 0.10.0
libtpu: 0.0.40
codegen_flags: <defaults>
</compile_context>

<pallas_src>
import jax
import jax.numpy as jnp
from jax.experimental import pallas as pl
from jax.experimental.pallas import tpu as pltpu


NEG_SLOPE = 0.01  # nn.LeakyReLU default


def _leaky_relu(x):
    return jnp.where(x > 0, x, NEG_SLOPE * x)


def classifier_kernel(x_ref, tz_ref, w1a_ref, w1b_ref, b1_ref,
                      w2_ref, b2_ref, w3_ref, b3_ref, out_ref):
    # Layer 1: two bf16 MXU dots (x_lm @ w1a + tz_flat @ w1b_stacked) summed
    # into a single f32 accumulation.  Concat + K-mean are folded into the
    # weights on the host side; inputs arrive f32 from HBM and are cast to
    # bf16 here (VPU has ample slack — kernel is DMA-bound).
    h = (jnp.dot(x_ref[...].astype(jnp.bfloat16), w1a_ref[...],
                 preferred_element_type=jnp.float32)
         + jnp.dot(tz_ref[...].astype(jnp.bfloat16), w1b_ref[...],
                   preferred_element_type=jnp.float32)
         + b1_ref[...])                                              # (TB, H) f32
    h = _leaky_relu(h)
    # Dropout -> identity (eval mode)

    # Layer 2.
    h = jnp.dot(h.astype(jnp.bfloat16), w2_ref[...],
                preferred_element_type=jnp.float32) + b2_ref[...]    # (TB, H) f32
    h = _leaky_relu(h)
    # Dropout -> identity (eval mode)

    # Layer 3: N=1 output -> lane-dense VPU multiply + lane reduce against a
    # (1, H) weight row; bias is an SMEM scalar.  Store lane-dense as (1, TB)
    # (the relayout rides on the otherwise-idle XLU).
    logits = jnp.sum(h * w3_ref[...], axis=-1) + b3_ref[0, 0]        # (TB,)
    out_ref[...] = jax.nn.sigmoid(logits)[None, :]                   # (1, TB)


def pack_params(params, k):
    """Fold the K-mean into the triplet weight, cast matmul weights to bf16.
    Done once, outside the per-call path."""
    w1a, w1b, b1, w2, b2, w3, b3 = params
    # mean(tz, axis=1) @ w1b  ==  tz.reshape(B, K*E) @ (tile(w1b, (K,1)) / K)
    w1b_stacked = jnp.tile(w1b, (k, 1)) / k                  # (K*E, H)
    return (w1a.astype(jnp.bfloat16),                        # (E, H)
            w1b_stacked.astype(jnp.bfloat16),                # (K*E, H)
            b1.astype(jnp.float32),                          # (1, H)
            w2.astype(jnp.bfloat16),                         # (H, H)
            b2.astype(jnp.float32),                          # (1, H)
            w3.T.astype(jnp.float32),                        # (1, H) row, f32
            b3.astype(jnp.float32))                          # (1, 1) -> SMEM


def _pick_batch_tile(B, block_b):
    tb = min(B, block_b)
    if tb == B:
        return tb
    # v7x: keep >= ~8 grid steps so both TensorCores (parallel batch axis)
    # stay busy, but don't shrink below 512 rows (per-step ~0.35us overhead).
    while tb > 512 and pl.cdiv(B, tb) < 8:
        tb //= 2
    # Alignment when tiling: sublane multiple of 8 for the input tiles and
    # lane multiple of 128 for the lane-dense (1, tb) output block.
    return max(128, (tb // 128) * 128)


def classifier_forward(x_lm, triplets_z, packed, *, block_b=2048):
    """packed = pack_params(params, K). Returns sigmoid probabilities (B, 1)."""
    B, E = x_lm.shape
    _, K, _ = triplets_z.shape
    w1a, w1b, b1, w2, b2, w3r, b3 = packed
    H = w2.shape[0]
    KE = K * E

    # Free contiguous reshape (no copy, no wrapper-side concat/cast): the
    # kernel streams the f32 inputs straight from HBM.
    tz_flat = triplets_z.reshape(B, KE)

    tb = _pick_batch_tile(B, block_b)
    grid = (pl.cdiv(B, tb),)

    weight = lambda shape: pl.BlockSpec(shape, lambda i: (0, 0))

    flops = 2 * B * (E * H + KE * H + H * H + H)
    bytes_accessed = (x_lm.size * 4 + tz_flat.size * 4
                      + (w1a.size + w1b.size + w2.size) * 2
                      + (b1.size + b2.size + w3r.size + b3.size) * 4
                      + B * 4)

    out_row = pl.pallas_call(
        classifier_kernel,
        out_shape=jax.ShapeDtypeStruct((1, B), jnp.float32),
        grid=grid,
        in_specs=[
            pl.BlockSpec((tb, E), lambda i: (i, 0)),          # x_lm (batch-tiled f32)
            pl.BlockSpec((tb, KE), lambda i: (i, 0)),         # triplets flat (f32)
            weight((E, H)),                                   # w1a (bf16)
            weight((KE, H)),                                  # w1b stacked/scaled (bf16)
            weight((1, H)),                                   # b1 (f32)
            weight((H, H)),                                   # w2 (bf16)
            weight((1, H)),                                   # b2 (f32)
            weight((1, H)),                                   # w3 row (f32)
            pl.BlockSpec(memory_space=pltpu.MemorySpace.SMEM),  # b3 scalar
        ],
        out_specs=pl.BlockSpec((1, tb), lambda i: (0, i)),    # lane-dense row
        compiler_params=pltpu.CompilerParams(
            dimension_semantics=("parallel",)),
        cost_estimate=pl.CostEstimate(
            flops=int(flops),
            transcendentals=int(B),
            bytes_accessed=int(bytes_accessed)),
    )(x_lm, tz_flat, w1a, w1b, b1, w2, b2, w3r, b3)

    # (1, B) -> (B, 1): free metadata reshape, matches the module's output.
    return out_row.reshape(B, 1)


def xavier_uniform(key, fan_in, fan_out):
    bound = jnp.sqrt(6.0 / (fan_in + fan_out))
    return jax.random.uniform(key, (fan_in, fan_out), jnp.float32, -bound, bound)


def init_params(key, emb_dim, hidden_dim):
    in_dim = 2 * emb_dim
    k1, k2, k3, kb1, kb2, kb3 = jax.random.split(key, 6)
    # nn.Linear weight: xavier_uniform (per init_params); bias: default uniform.
    w1 = xavier_uniform(k1, in_dim, hidden_dim)             # (2E, H), [in, out]
    w1a, w1b = w1[:emb_dim], w1[emb_dim:]
    bb1 = 1.0 / jnp.sqrt(in_dim)
    b1 = jax.random.uniform(kb1, (1, hidden_dim), jnp.float32, -bb1, bb1)
    w2 = xavier_uniform(k2, hidden_dim, hidden_dim)         # (H, H)
    bb2 = 1.0 / jnp.sqrt(hidden_dim)
    b2 = jax.random.uniform(kb2, (1, hidden_dim), jnp.float32, -bb2, bb2)
    w3 = xavier_uniform(k3, hidden_dim, 1)                  # (H, 1)
    b3 = jax.random.uniform(kb3, (1, 1), jnp.float32, -bb2, bb2)
    return (w1a, w1b, b1, w2, b2, w3, b3)


def reference_forward(x_lm, triplets_z, params):
    """Pure-JAX f32 reference mirroring the PyTorch forward (eval mode)."""
    w1a, w1b, b1, w2, b2, w3, b3 = params
    tz = triplets_z.mean(axis=1)
    x = jnp.concatenate([x_lm, tz], axis=1)
    w1 = jnp.concatenate([w1a, w1b], axis=0)
    h = jax.nn.leaky_relu(x @ w1 + b1, NEG_SLOPE)
    h = jax.nn.leaky_relu(h @ w2 + b2, NEG_SLOPE)
    return jax.nn.sigmoid(h @ w3 + b3)


if __name__ == "__main__":
    # Small synthetic shapes consistent with the module:
    #   lm embedding dim E = 64  -> input_dim = 2*E = 128
    #   hidden_dim H = 128, k = 4 triplets, batch B = 8
    B, K, E, H = 8, 4, 64, 128

    key = jax.random.PRNGKey(0)
    kx, kz, kp = jax.random.split(key, 3)
    x_lm = jax.random.normal(kx, (B, E), jnp.float32)
    triplets_z = jax.random.normal(kz, (B, K, E), jnp.float32)
    params = init_params(kp, E, H)
    packed = pack_params(params, K)

    y_hat = classifier_forward(x_lm, triplets_z, packed)
    y_hat = jax.block_until_ready(y_hat)

    y_ref = reference_forward(x_lm, triplets_z, params)
    assert y_hat.shape == (B, 1)
    # bf16 matmul operands (f32 accumulation) -> loosened tolerance.
    assert jnp.allclose(y_hat, y_ref, atol=2e-2, rtol=2e-2), "mismatch vs reference"

    print("KERNEL_OK")
</pallas_src>

<mosaic_0001>
module attributes {stable_mosaic.version = 11 : i64} {
  func.func @classifier_kernel(%arg0: i32, %arg1: memref<8x64xf32, #tpu.memory_space<vmem>>, %arg2: memref<8x256xf32, #tpu.memory_space<vmem>>, %arg3: memref<64x128xbf16, #tpu.memory_space<vmem>>, %arg4: memref<256x128xbf16, #tpu.memory_space<vmem>>, %arg5: memref<1x128xf32, #tpu.memory_space<vmem>>, %arg6: memref<128x128xbf16, #tpu.memory_space<vmem>>, %arg7: memref<1x128xf32, #tpu.memory_space<vmem>>, %arg8: memref<1x128xf32, #tpu.memory_space<vmem>>, %arg9: memref<1x1xf32, #tpu.memory_space<smem>>, %arg10: memref<1x8xf32, #tpu.memory_space<vmem>>) attributes {dimension_semantics = [#tpu.dimension_semantics<parallel>], iteration_bounds = array<i64: 1>, scalar_prefetch = 0 : i64, scratch_operands = 0 : i64, tpu.core_type = #tpu.core_type<tc>, window_params = [{transform_indices = @transform_0, window_bounds = array<i64: 8, 64>}, {transform_indices = @transform_1, window_bounds = array<i64: 8, 256>}, {pipeline_mode = #tpu.pipeline_mode<synchronous>, transform_indices = @transform_2, window_bounds = array<i64: 64, 128>}, {pipeline_mode = #tpu.pipeline_mode<synchronous>, transform_indices = @transform_3, window_bounds = array<i64: 256, 128>}, {pipeline_mode = #tpu.pipeline_mode<synchronous>, transform_indices = @transform_4, window_bounds = array<i64: 1, 128>}, {pipeline_mode = #tpu.pipeline_mode<synchronous>, transform_indices = @transform_5, window_bounds = array<i64: 128, 128>}, {pipeline_mode = #tpu.pipeline_mode<synchronous>, transform_indices = @transform_6, window_bounds = array<i64: 1, 128>}, {pipeline_mode = #tpu.pipeline_mode<synchronous>, transform_indices = @transform_7, window_bounds = array<i64: 1, 128>}, {transform_indices = @transform_8, window_bounds = array<i64: 1, 1>}, {transform_indices = @transform_9, window_bounds = array<i64: 1, 8>}]} {
    %c0 = arith.constant 0 : index
    %c0_0 = arith.constant 0 : index
    %0 = vector.load %arg1[%c0, %c0_0] : memref<8x64xf32, #tpu.memory_space<vmem>>, vector<8x64xf32>
    %1 = arith.truncf %0 : vector<8x64xf32> to vector<8x64xbf16>
    %c0_1 = arith.constant 0 : index
    %c0_2 = arith.constant 0 : index
    %2 = vector.load %arg3[%c0_1, %c0_2] : memref<64x128xbf16, #tpu.memory_space<vmem>>, vector<64x128xbf16>
    %cst = arith.constant dense<0.000000e+00> : vector<8x128xf32>
    %3 = tpu.matmul %1, %2, %cst {dimension_numbers = #tpu.dot_dimension_numbers<[1], [0], [0], [1], [0, 0, 1, 1], [], []>} : vector<8x64xbf16>, vector<64x128xbf16>, vector<8x128xf32> -> vector<8x128xf32>
    %c0_3 = arith.constant 0 : index
    %c0_4 = arith.constant 0 : index
    %4 = vector.load %arg2[%c0_3, %c0_4] : memref<8x256xf32, #tpu.memory_space<vmem>>, vector<8x256xf32>
    %5 = arith.truncf %4 : vector<8x256xf32> to vector<8x256xbf16>
    %c0_5 = arith.constant 0 : index
    %c0_6 = arith.constant 0 : index
    %6 = vector.load %arg4[%c0_5, %c0_6] : memref<256x128xbf16, #tpu.memory_space<vmem>>, vector<256x128xbf16>
    %cst_7 = arith.constant dense<0.000000e+00> : vector<8x128xf32>
    %7 = tpu.matmul %5, %6, %cst_7 {dimension_numbers = #tpu.dot_dimension_numbers<[1], [0], [0], [1], [0, 0, 1, 1], [], []>} : vector<8x256xbf16>, vector<256x128xbf16>, vector<8x128xf32> -> vector<8x128xf32>
    %8 = arith.addf %3, %7 : vector<8x128xf32>
    %c0_8 = arith.constant 0 : index
    %c0_9 = arith.constant 0 : index
    %9 = vector.load %arg5[%c0_8, %c0_9] : memref<1x128xf32, #tpu.memory_space<vmem>>, vector<1x128xf32>
    %10 = vector.broadcast %9 : vector<1x128xf32> to vector<8x128xf32>
    %11 = arith.addf %8, %10 : vector<8x128xf32>
    %cst_10 = arith.constant 0.000000e+00 : f32
    %12 = vector.broadcast %cst_10 : f32 to vector<8x128xf32>
    %13 = arith.cmpf ogt, %11, %12 : vector<8x128xf32>
    %cst_11 = arith.constant 0.00999999977 : f32
    %14 = vector.broadcast %cst_11 : f32 to vector<8x128xf32>
    %15 = arith.mulf %14, %11 : vector<8x128xf32>
    %16 = arith.select %13, %11, %15 : vector<8x128xi1>, vector<8x128xf32>
    %17 = arith.truncf %16 : vector<8x128xf32> to vector<8x128xbf16>
    %c0_12 = arith.constant 0 : index
    %c0_13 = arith.constant 0 : index
    %18 = vector.load %arg6[%c0_12, %c0_13] : memref<128x128xbf16, #tpu.memory_space<vmem>>, vector<128x128xbf16>
    %cst_14 = arith.constant dense<0.000000e+00> : vector<8x128xf32>
    %19 = tpu.matmul %17, %18, %cst_14 {dimension_numbers = #tpu.dot_dimension_numbers<[1], [0], [0], [1], [0, 0, 1, 1], [], []>} : vector<8x128xbf16>, vector<128x128xbf16>, vector<8x128xf32> -> vector<8x128xf32>
    %c0_15 = arith.constant 0 : index
    %c0_16 = arith.constant 0 : index
    %20 = vector.load %arg7[%c0_15, %c0_16] : memref<1x128xf32, #tpu.memory_space<vmem>>, vector<1x128xf32>
    %21 = vector.broadcast %20 : vector<1x128xf32> to vector<8x128xf32>
    %22 = arith.addf %19, %21 : vector<8x128xf32>
    %cst_17 = arith.constant 0.000000e+00 : f32
    %23 = vector.broadcast %cst_17 : f32 to vector<8x128xf32>
    %24 = arith.cmpf ogt, %22, %23 : vector<8x128xf32>
    %cst_18 = arith.constant 0.00999999977 : f32
    %25 = vector.broadcast %cst_18 : f32 to vector<8x128xf32>
    %26 = arith.mulf %25, %22 : vector<8x128xf32>
    %27 = arith.select %24, %22, %26 : vector<8x128xi1>, vector<8x128xf32>
    %c0_19 = arith.constant 0 : index
    %c0_20 = arith.constant 0 : index
    %28 = vector.load %arg8[%c0_19, %c0_20] : memref<1x128xf32, #tpu.memory_space<vmem>>, vector<1x128xf32>
    %29 = vector.broadcast %28 : vector<1x128xf32> to vector<8x128xf32>
    %30 = arith.mulf %27, %29 : vector<8x128xf32>
    %cst_21 = arith.constant dense<0.000000e+00> : vector<8xf32>
    %31 = vector.multi_reduction <add>, %30, %cst_21 [1] : vector<8x128xf32> to vector<8xf32>
    %c0_22 = arith.constant 0 : index
    %c0_23 = arith.constant 0 : index
    %32 = memref.load %arg9[%c0_22, %c0_23] : memref<1x1xf32, #tpu.memory_space<smem>>
    %33 = vector.broadcast %32 : f32 to vector<8xf32>
    %34 = arith.addf %31, %33 : vector<8xf32>
    %35 = arith.negf %34 : vector<8xf32>
    %36 = math.exp %35 : vector<8xf32>
    %cst_24 = arith.constant 1.000000e+00 : f32
    %37 = vector.broadcast %cst_24 : f32 to vector<8xf32>
    %38 = arith.addf %37, %36 : vector<8xf32>
    %39 = arith.divf %37, %38 : vector<8xf32>
    %40 = vector.shape_cast %39 : vector<8xf32> to vector<1x8xf32>
    %c0_25 = arith.constant 0 : index
    %c0_26 = arith.constant 0 : index
    %41 = vector.load %arg10[%c0_25, %c0_26] : memref<1x8xf32, #tpu.memory_space<vmem>>, vector<1x8xf32>
    tpu.vector_store %arg10[%c0_25, %c0_26], %40 {strides = array<i32>} : memref<1x8xf32, #tpu.memory_space<vmem>>, vector<1x8xf32>,
    return
  }
  func.func @transform_0(%arg0: i32) -> (i32, i32) {
    %c0_i32 = arith.constant 0 : i32
    %c0_i32_0 = arith.constant 0 : i32
    return %arg0, %c0_i32 : i32, i32
  }
  func.func @transform_1(%arg0: i32) -> (i32, i32) {
    %c0_i32 = arith.constant 0 : i32
    %c0_i32_0 = arith.constant 0 : i32
    return %arg0, %c0_i32 : i32, i32
  }
  func.func @transform_2(%arg0: i32) -> (i32, i32) {
    %c0_i32 = arith.constant 0 : i32
    %c0_i32_0 = arith.constant 0 : i32
    %c0_i32_1 = arith.constant 0 : i32
    return %c0_i32, %c0_i32_0 : i32, i32
  }
  func.func @transform_3(%arg0: i32) -> (i32, i32) {
    %c0_i32 = arith.constant 0 : i32
    %c0_i32_0 = arith.constant 0 : i32
    %c0_i32_1 = arith.constant 0 : i32
    return %c0_i32, %c0_i32_0 : i32, i32
  }
  func.func @transform_4(%arg0: i32) -> (i32, i32) {
    %c0_i32 = arith.constant 0 : i32
    %c0_i32_0 = arith.constant 0 : i32
    %c0_i32_1 = arith.constant 0 : i32
    return %c0_i32, %c0_i32_0 : i32, i32
  }
  func.func @transform_5(%arg0: i32) -> (i32, i32) {
    %c0_i32 = arith.constant 0 : i32
    %c0_i32_0 = arith.constant 0 : i32
    %c0_i32_1 = arith.constant 0 : i32
    return %c0_i32, %c0_i32_0 : i32, i32
  }
  func.func @transform_6(%arg0: i32) -> (i32, i32) {
    %c0_i32 = arith.constant 0 : i32
    %c0_i32_0 = arith.constant 0 : i32
    %c0_i32_1 = arith.constant 0 : i32
    return %c0_i32, %c0_i32_0 : i32, i32
  }
  func.func @transform_7(%arg0: i32) -> (i32, i32) {
    %c0_i32 = arith.constant 0 : i32
    %c0_i32_0 = arith.constant 0 : i32
    %c0_i32_1 = arith.constant 0 : i32
    return %c0_i32, %c0_i32_0 : i32, i32
  }
  func.func @transform_8(%arg0: i32) -> (i32, i32) {
    %c0_i32 = arith.constant 0 : i32
    %c0_i32_0 = arith.constant 0 : i32
    %c0_i32_1 = arith.constant 0 : i32
    return %c0_i32, %c0_i32_0 : i32, i32
  }
  func.func @transform_9(%arg0: i32) -> (i32, i32) {
    %c0_i32 = arith.constant 0 : i32
    %c0_i32_0 = arith.constant 0 : i32
    return %c0_i32, %arg0 : i32, i32
  }
}

</mosaic_0001>

<llo_original>
// kernel: tpu_custom_call.1
$region0: #{tpu_custom_call.1}
  #allocation0 [shape = 'u32[]', space=smem, size = 0x4, offset = 0x4, fixed_abs, tag = 'smem constant byte address 0x4 - core index']
  #allocation1 [shape = 'u32[144,128]{1,0:T(1,128)}', space=vmem, size = 0x12000, scoped, tag = 'internal scratch']
  #allocation2 [shape = 'f32[1,1]{1,0:T(1,128)S(6)}', space=smem, size = 0x200, scoped, tag = 'scoped memory for tpu_custom_call.1']
  %s0 = inlined_call_operand.hbm [shape: f32[8,64], index: 0, kind: input, shape index: {}]
  %s1 = inlined_call_operand.hbm [shape: f32[8,256], index: 1, kind: input, shape index: {}]
  %s2 = inlined_call_operand.hbm [shape: bf16[64,128], index: 2, kind: input, shape index: {}]
  %s3 = inlined_call_operand.hbm [shape: bf16[256,128], index: 3, kind: input, shape index: {}]
  %s4 = inlined_call_operand.vmem [shape: f32[1,128], index: 4, kind: input, shape index: {}]
  %s5 = inlined_call_operand.hbm [shape: bf16[128,128], index: 5, kind: input, shape index: {}]
  %s6 = inlined_call_operand.vmem [shape: f32[1,128], index: 6, kind: input, shape index: {}]
  %s7 = inlined_call_operand.vmem [shape: f32[1,128], index: 7, kind: input, shape index: {}]
  %s8 = inlined_call_operand.<no memory space> [shape: f32[1,1], index: 8, kind: input, shape index: {}]
  %s9 = inlined_call_operand.hbm [shape: f32[1,8], index: 9, kind: output, shape index: {}]
  %s10 = sld [smem:[#allocation0]]
  $region66: #{tpu_custom_call.1} parent=0
    _
  %s12 = ssub.s32 1, %s10
  %s13 = scalar_select 0, %s12, %s10
  %14 = sst [smem:[#allocation2]] %s8
  $region1: #{tpu_custom_call.1} parent=0
    #allocation3 [shape = 'u8[4096]{0}', space=vmem, size = 0x1000, scoped, tag = 'input window, operand 0, single buffered']
    #allocation4 [shape = 's32[1]{0}', space=sflag, size = 0x4, scoped, tag = 'scoped memory for tpu_custom_call.1']
    #allocation5 [shape = 's32[1]{0}', space=sflag, size = 0x4, scoped, tag = 'scoped memory for tpu_custom_call.1']
    #allocation6 [shape = 'u8[8192]{0}', space=vmem, size = 0x2000, scoped, tag = 'input window, operand 1, single buffered']
    #allocation7 [shape = 's32[1]{0}', space=sflag, size = 0x4, scoped, tag = 'scoped memory for tpu_custom_call.1']
    #allocation8 [shape = 'u8[16384]{0}', space=vmem, size = 0x4000, scoped, tag = 'input window, operand 2, single buffered']
    #allocation9 [shape = 'u8[65536]{0}', space=vmem, size = 0x10000, scoped, tag = 'input window, operand 3, single buffered']
    #allocation10 [shape = 's32[1]{0}', space=sflag, size = 0x4, scoped, tag = 'scoped memory for tpu_custom_call.1']
    #allocation11 [shape = 'u8[32768]{0}', space=vmem, size = 0x8000, scoped, tag = 'input window, operand 5, single buffered']
    #allocation12 [shape = 'u8[512]{0}', space=vmem, size = 0x400, scoped, tag = 'output window, operand 0, single buffered']
    %15 = vsyncpa [#allocation4], 0
    %16 = vsyncpa [#allocation7], 0
    %17 = vsyncpa [#allocation10], 0
    %18 = vsyncpa [#allocation5], 0
    // Predicated region
    $region2: #{tpu_custom_call.1} parent=1 // pred_check
      _
    $region3: #{tpu_custom_call.1} parent=1 // pred_check_branch
      %20 = sbr.rel (0) target = $region5
    $region4: #{tpu_custom_call.1} parent=1 // pred_region
      %s22 = ssub.s32 128, 128
      %23 = vsyncadd [#allocation4], %s22
      %s25 = sshll.u32 [#allocation3], 4
      %s26 = int_to_ptr.vmem [resolvable:$true] %s25
      %28 = dma.hbm_to_vmem [thread:$0]  %s0, 128, %s26, [#allocation4]
    $region5: #{tpu_custom_call.1} parent=1 // pred_fallthru
      _
    // Predicated region
    $region6: #{tpu_custom_call.1} parent=1 // pred_check
      _
    $region7: #{tpu_custom_call.1} parent=1 // pred_check_branch
      %30 = sbr.rel (0) target = $region9
    $region8: #{tpu_custom_call.1} parent=1 // pred_region
      %s32 = ssub.s32 256, 256
      %33 = vsyncadd [#allocation7], %s32
      %s35 = sshll.u32 [#allocation6], 4
      %s36 = int_to_ptr.vmem [resolvable:$true] %s35
      %38 = dma.hbm_to_vmem [thread:$0]  %s1, 256, %s36, [#allocation7]
    $region9: #{tpu_custom_call.1} parent=1 // pred_fallthru
      _
    // Predicated region
    $region10: #{tpu_custom_call.1} parent=1 // pred_check
      _
    $region11: #{tpu_custom_call.1} parent=1 // pred_check_branch
      %40 = sbr.rel (0) target = $region13
    $region12: #{tpu_custom_call.1} parent=1 // pred_region
      %s42 = ssub.s32 512, 512
      %43 = vsyncadd [#allocation7], %s42
      %s44 = sshll.u32 [#allocation8], 4
      %s45 = int_to_ptr.vmem [resolvable:$true] %s44
      %50 = dma.hbm_to_vmem [thread:$0]  %s2, 512, %s45, [#allocation7], 64, 64, 4
    $region13: #{tpu_custom_call.1} parent=1 // pred_fallthru
      _
    // Predicated region
    $region14: #{tpu_custom_call.1} parent=1 // pred_check
      _
    $region15: #{tpu_custom_call.1} parent=1 // pred_check_branch
      %52 = sbr.rel (0) target = $region17
    $region16: #{tpu_custom_call.1} parent=1 // pred_region
      %s54 = ssub.s32 2048, 2048
      %55 = vsyncadd [#allocation10], %s54
      %s56 = sshll.u32 [#allocation9], 4
      %s57 = int_to_ptr.vmem [resolvable:$true] %s56
      %62 = dma.hbm_to_vmem [thread:$0]  %s3, 2048, %s57, [#allocation10], 64, 64, 4
    $region17: #{tpu_custom_call.1} parent=1 // pred_fallthru
      _
    // Predicated region
    $region18: #{tpu_custom_call.1} parent=1 // pred_check
      _
    $region19: #{tpu_custom_call.1} parent=1 // pred_check_branch
      %64 = sbr.rel (0) target = $region21
    $region20: #{tpu_custom_call.1} parent=1 // pred_region
      _
    $region21: #{tpu_custom_call.1} parent=1 // pred_fallthru
      _
    // Predicated region
    $region22: #{tpu_custom_call.1} parent=1 // pred_check
      _
    $region23: #{tpu_custom_call.1} parent=1 // pred_check_branch
      %66 = sbr.rel (0) target = $region25
    $region24: #{tpu_custom_call.1} parent=1 // pred_region
      %s68 = ssub.s32 1024, 1024
      %69 = vsyncadd [#allocation10], %s68
      %s70 = sshll.u32 [#allocation11], 4
      %s71 = int_to_ptr.vmem [resolvable:$true] %s70
      %76 = dma.hbm_to_vmem [thread:$0]  %s5, 1024, %s71, [#allocation10], 64, 64, 4
    $region25: #{tpu_custom_call.1} parent=1 // pred_fallthru
      _
    // Predicated region
    $region26: #{tpu_custom_call.1} parent=1 // pred_check
      _
    $region27: #{tpu_custom_call.1} parent=1 // pred_check_branch
      %78 = sbr.rel (0) target = $region29
    $region28: #{tpu_custom_call.1} parent=1 // pred_region
      _
    $region29: #{tpu_custom_call.1} parent=1 // pred_fallthru
      _
    // Predicated region
    $region30: #{tpu_custom_call.1} parent=1 // pred_check
      _
    $region31: #{tpu_custom_call.1} parent=1 // pred_check_branch
      %80 = sbr.rel (0) target = $region33
    $region32: #{tpu_custom_call.1} parent=1 // pred_region
      _
    $region33: #{tpu_custom_call.1} parent=1 // pred_fallthru
      _
    // Predicated region
    $region34: #{tpu_custom_call.1} parent=1 // pred_check
      _
    $region35: #{tpu_custom_call.1} parent=1 // pred_check_branch
      %82 = sbr.rel (0) target = $region37
    $region36: #{tpu_custom_call.1} parent=1 // pred_region
      _
    $region37: #{tpu_custom_call.1} parent=1 // pred_fallthru
      _
    // Predicated region
    $region38: #{tpu_custom_call.1} parent=1 // pred_check
      _
    $region39: #{tpu_custom_call.1} parent=1 // pred_check_branch
      %84 = sbr.rel (0) target = $region41
    $region40: #{tpu_custom_call.1} parent=1 // pred_region
      %85 = dma.done [#allocation4], 128
    $region41: #{tpu_custom_call.1} parent=1 // pred_fallthru
      _
    // Predicated region
    $region42: #{tpu_custom_call.1} parent=1 // pred_check
      _
    $region43: #{tpu_custom_call.1} parent=1 // pred_check_branch
      %87 = sbr.rel (0) target = $region45
    $region44: #{tpu_custom_call.1} parent=1 // pred_region
      %88 = dma.done [#allocation7], 256
    $region45: #{tpu_custom_call.1} parent=1 // pred_fallthru
      _
    // Predicated region
    $region46: #{tpu_custom_call.1} parent=1 // pred_check
      _
    $region47: #{tpu_custom_call.1} parent=1 // pred_check_branch
      %90 = sbr.rel (0) target = $region49
    $region48: #{tpu_custom_call.1} parent=1 // pred_region
      %91 = dma.done [#allocation7], 512
    $region49: #{tpu_custom_call.1} parent=1 // pred_fallthru
      _
    // Predicated region
    $region50: #{tpu_custom_call.1} parent=1 // pred_check
      _
    $region51: #{tpu_custom_call.1} parent=1 // pred_check_branch
      %93 = sbr.rel (0) target = $region53
    $region52: #{tpu_custom_call.1} parent=1 // pred_region
      %94 = dma.done [#allocation10], 2048
    $region53: #{tpu_custom_call.1} parent=1 // pred_fallthru
      _
    // Predicated region
    $region54: #{tpu_custom_call.1} parent=1 // pred_check
      _
    $region55: #{tpu_custom_call.1} parent=1 // pred_check_branch
      %96 = sbr.rel (0) target = $region57
    $region56: #{tpu_custom_call.1} parent=1 // pred_region
      %97 = dma.done [#allocation10], 1024
    $region57: #{tpu_custom_call.1} parent=1 // pred_fallthru
      _
    %v99 = vld [vmem:[#allocation3] sm:$0xff]
    %v100 = vpack.c.bf16 %v99, %v99
    %v101 = vld [vmem:[#allocation8] sm:$0xf]
    %v102 = vld [vmem:[#allocation8 + $0x4] sm:$0xf]
    %v103 = vld [vmem:[#allocation8 + $0x8] sm:$0xf]
    %v104 = vld [vmem:[#allocation8 + $0xc] sm:$0xf]
    %v105 = vld [vmem:[#allocation8 + $0x10] sm:$0xf]
    %v106 = vld [vmem:[#allocation8 + $0x14] sm:$0xf]
    %v107 = vld [vmem:[#allocation8 + $0x18] sm:$0xf]
    %v108 = vld [vmem:[#allocation8 + $0x1c] sm:$0xf]
    %v109 = vld [vmem:[#allocation6] sm:$0xff]
    %v110 = vld [vmem:[#allocation6 + $0x8] sm:$0xff]
    %v111 = vpack.c.bf16 %v109, %v109
    %v112 = vpack.c.bf16 %v110, %v110
    %v113 = vld [vmem:[#allocation9] sm:$0xf]
    %v114 = vld [vmem:[#allocation9 + $0x4] sm:$0xf]
    %v115 = vld [vmem:[#allocation9 + $0x8] sm:$0xf]
    %v116 = vld [vmem:[#allocation9 + $0xc] sm:$0xf]
    %v117 = vld [vmem:[#allocation9 + $0x10] sm:$0xf]
    %v118 = vld [vmem:[#allocation9 + $0x14] sm:$0xf]
    %v119 = vld [vmem:[#allocation9 + $0x18] sm:$0xf]
    %v120 = vld [vmem:[#allocation9 + $0x1c] sm:$0xf]
    %v121 = vld [vmem:[#allocation9 + $0x20] sm:$0xf]
    %v122 = vld [vmem:[#allocation9 + $0x24] sm:$0xf]
    %v123 = vld [vmem:[#allocation9 + $0x28] sm:$0xf]
    %v124 = vld [vmem:[#allocation9 + $0x2c] sm:$0xf]
    %v125 = vld [vmem:[#allocation9 + $0x30] sm:$0xf]
    %v126 = vld [vmem:[#allocation9 + $0x34] sm:$0xf]
    %v127 = vld [vmem:[#allocation9 + $0x38] sm:$0xf]
    %v128 = vld [vmem:[#allocation9 + $0x3c] sm:$0xf]
    %v129 = vld [vmem:[#allocation9 + $0x40] sm:$0xf]
    %v130 = vld [vmem:[#allocation9 + $0x44] sm:$0xf]
    %v131 = vld [vmem:[#allocation9 + $0x48] sm:$0xf]
    %v132 = vld [vmem:[#allocation9 + $0x4c] sm:$0xf]
    %v133 = vld [vmem:[#allocation9 + $0x50] sm:$0xf]
    %v134 = vld [vmem:[#allocation9 + $0x54] sm:$0xf]
    %v135 = vld [vmem:[#allocation9 + $0x58] sm:$0xf]
    %v136 = vld [vmem:[#allocation9 + $0x5c] sm:$0xf]
    %v137 = vld [vmem:[#allocation9 + $0x60] sm:$0xf]
    %v138 = vld [vmem:[#allocation9 + $0x64] sm:$0xf]
    %v139 = vld [vmem:[#allocation9 + $0x68] sm:$0xf]
    %v140 = vld [vmem:[#allocation9 + $0x6c] sm:$0xf]
    %v141 = vld [vmem:[#allocation9 + $0x70] sm:$0xf]
    %v142 = vld [vmem:[#allocation9 + $0x74] sm:$0xf]
    %v143 = vld [vmem:[#allocation9 + $0x78] sm:$0xf]
    %v144 = vld [vmem:[#allocation9 + $0x7c] sm:$0xf]
    %v177 = vunpack.c.l.b16 %v113
    %v178 = vunpack.c.l.b16 %v114
    %v179 = vunpack.c.l.b16 %v115
    %v180 = vunpack.c.l.b16 %v116
    %v181 = vunpack.c.l.b16 %v117
    %v182 = vunpack.c.l.b16 %v118
    %v183 = vunpack.c.l.b16 %v119
    %v184 = vunpack.c.l.b16 %v120
    %v185 = vunpack.c.l.b16 %v121
    %v186 = vunpack.c.l.b16 %v122
    %v187 = vunpack.c.l.b16 %v123
    %v188 = vunpack.c.l.b16 %v124
    %v189 = vunpack.c.l.b16 %v125
    %v190 = vunpack.c.l.b16 %v126
    %v191 = vunpack.c.l.b16 %v127
    %v192 = vunpack.c.l.b16 %v128
    %v193 = vunpack.c.l.b16 %v129
    %v194 = vunpack.c.l.b16 %v130
    %v195 = vunpack.c.l.b16 %v131
    %v196 = vunpack.c.l.b16 %v132
    %v197 = vunpack.c.l.b16 %v133
    %v198 = vunpack.c.l.b16 %v134
    %v199 = vunpack.c.l.b16 %v135
    %v200 = vunpack.c.l.b16 %v136
    %v201 = vunpack.c.l.b16 %v137
    %v202 = vunpack.c.l.b16 %v138
    %v203 = vunpack.c.l.b16 %v139
    %v204 = vunpack.c.l.b16 %v140
    %v205 = vunpack.c.l.b16 %v141
    %v206 = vunpack.c.l.b16 %v142
    %v207 = vunpack.c.l.b16 %v143
    %v208 = vunpack.c.l.b16 %v144
    %v209 = vpack.c.b16 %v178, %v177
    %v210 = vpack.c.b16 %v180, %v179
    %v211 = vpack.c.b16 %v182, %v181
    %v212 = vpack.c.b16 %v184, %v183
    %v213 = vpack.c.b16 %v186, %v185
    %v214 = vpack.c.b16 %v188, %v187
    %v215 = vpack.c.b16 %v190, %v189
    %v216 = vpack.c.b16 %v192, %v191
    %v217 = vpack.c.b16 %v194, %v193
    %v218 = vpack.c.b16 %v196, %v195
    %v219 = vpack.c.b16 %v198, %v197
    %v220 = vpack.c.b16 %v200, %v199
    %v221 = vpack.c.b16 %v202, %v201
    %v222 = vpack.c.b16 %v204, %v203
    %v223 = vpack.c.b16 %v206, %v205
    %v224 = vpack.c.b16 %v208, %v207
    %241 = vmatprep.subr.bf16.mxu0 0
    %242 = vmatpush1.bf16.msra.mxu0 %v209
    %243 = vmatprep.subr.bf16.mxu0 0
    %244 = vmatpush1.bf16.msra.mxu0 %v210
    %245 = vmatprep.subr.bf16.mxu0 0
    %246 = vmatpush1.bf16.msra.mxu0 %v211
    %247 = vmatprep.subr.bf16.mxu0 0
    %248 = vmatpush1.bf16.msra.mxu0 %v212
    %249 = vmatprep.subr.bf16.mxu0 0
    %250 = vmatpush1.bf16.msra.mxu0 %v213
    %251 = vmatprep.subr.bf16.mxu0 0
    %252 = vmatpush1.bf16.msra.mxu0 %v214
    %253 = vmatprep.subr.bf16.mxu0 0
    %254 = vmatpush1.bf16.msra.mxu0 %v215
    %255 = vmatprep.subr.bf16.mxu0 0
    %256 = vmatpush1.bf16.msra.mxu0 %v216
    %257 = vmatprep.subr.bf16.mxu0 0
    %258 = vmatpush1.bf16.msra.mxu0 %v217
    %259 = vmatprep.subr.bf16.mxu0 0
    %260 = vmatpush1.bf16.msra.mxu0 %v218
    %261 = vmatprep.subr.bf16.mxu0 0
    %262 = vmatpush1.bf16.msra.mxu0 %v219
    %263 = vmatprep.subr.bf16.mxu0 0
    %264 = vmatpush1.bf16.msra.mxu0 %v220
    %265 = vmatprep.subr.bf16.mxu0 0
    %266 = vmatpush1.bf16.msra.mxu0 %v221
    %267 = vmatprep.subr.bf16.mxu0 0
    %268 = vmatpush1.bf16.msra.mxu0 %v222
    %269 = vmatprep.subr.bf16.mxu0 0
    %270 = vmatpush1.bf16.msra.mxu0 %v223
    %271 = vmatprep.subr.bf16.mxu0 0
    %272 = vmatpush1.bf16.msra.mxu0 %v224
    %273 = vmatprep.mubr.bf16.mxu0 %v112
    %274 = vmatmul.mubr.bf16.gmra.mrb[0].mxu0 %v111
    %v275 = vpop.f32.mrb[0].mxu0
    %v276 = vadd.f32 0.0, %v275
    %v277 = vpop.f32.mrb[0].mxu0
    %v278 = vpop.f32.mrb[0].mxu0
    %v279 = vpop.f32.mrb[0].mxu0
    %280 = vdwg.mxu0
    %v289 = vunpack.c.l.b16 %v101
    %v290 = vunpack.c.l.b16 %v102
    %v291 = vunpack.c.l.b16 %v103
    %v292 = vunpack.c.l.b16 %v104
    %v293 = vunpack.c.l.b16 %v105
    %v294 = vunpack.c.l.b16 %v106
    %v295 = vunpack.c.l.b16 %v107
    %v296 = vunpack.c.l.b16 %v108
    %v297 = vpack.c.b16 %v290, %v289
    %v298 = vpack.c.b16 %v292, %v291
    %v299 = vpack.c.b16 %v294, %v293
    %v300 = vpack.c.b16 %v296, %v295
    %vm305 = vcmask 523264
    %v307 = vsel %vm305, %v100, 0
    %309 = vmatprep.subr.bf16.mxu0 0
    %310 = vmatpush1.bf16.msra.mxu0 %v297
    %311 = vmatprep.subr.bf16.mxu0 0
    %312 = vmatpush1.bf16.msra.mxu0 %v298
    %313 = vmatprep.subr.bf16.mxu0 0
    %314 = vmatpush1.bf16.msra.mxu0 %v299
    %315 = vmatprep.subr.bf16.mxu0 0
    %316 = vmatpush1.bf16.msra.mxu0 %v300
    %317 = vmatprep.subr.bf16.mxu0 0
    %318 = vmatpush1.bf16.msra.mxu0 0
    %319 = vmatprep.subr.bf16.mxu0 0
    %320 = vmatpush1.bf16.msra.mxu0 0
    %321 = vmatprep.subr.bf16.mxu0 0
    %322 = vmatpush1.bf16.msra.mxu0 0
    %323 = vmatprep.subr.bf16.mxu0 0
    %324 = vmatpush1.bf16.msra.mxu0 0
    %325 = vmatprep.subr.bf16.mxu0 0
    %326 = vmatpush1.bf16.msra.mxu0 0
    %327 = vmatprep.subr.bf16.mxu0 0
    %328 = vmatpush1.bf16.msra.mxu0 0
    %329 = vmatprep.subr.bf16.mxu0 0
    %330 = vmatpush1.bf16.msra.mxu0 0
    %331 = vmatprep.subr.bf16.mxu0 0
    %332 = vmatpush1.bf16.msra.mxu0 0
    %333 = vmatprep.subr.bf16.mxu0 0
    %334 = vmatpush1.bf16.msra.mxu0 0
    %335 = vmatprep.subr.bf16.mxu0 0
    %336 = vmatpush1.bf16.msra.mxu0 0
    %337 = vmatprep.subr.bf16.mxu0 0
    %338 = vmatpush1.bf16.msra.mxu0 0
    %339 = vmatprep.subr.bf16.mxu0 0
    %340 = vmatpush1.bf16.msra.mxu0 0
    %341 = vmatprep.mubr.bf16.mxu0 0
    %342 = vmatmul.mubr.bf16.gmra.mrb[0].mxu0 %v307
    %v343 = vpop.f32.mrb[0].mxu0
    %v344 = vadd.f32 %v276, %v343
    %v345 = vpop.f32.mrb[0].mxu0
    %v346 = vpop.f32.mrb[0].mxu0
    %v347 = vpop.f32.mrb[0].mxu0
    %348 = vdwg.mxu0
    %v349 = vld [vmem:[%s4] sm:$0x1]
    %v351 = vlaneseq
    %v352 = vshrl.u32 %v351, 7
    %v353 = vsub.s32 0, %v352
    %v354 = vrot.slane %v349, %v353
    %v356 = vadd.f32 %v344, %v354
    %vm357 = vcmp.gt.f32.partialorder %v356, 0.0
    %v358 = vmul.f32 %v356, 0.01
    %v359 = vsel %vm357, %v356, %v358
    %v360 = vpack.c.bf16 %v359, %v359
    %v361 = vld [vmem:[#allocation11] sm:$0xf]
    %v362 = vld [vmem:[#allocation11 + $0x4] sm:$0xf]
    %v363 = vld [vmem:[#allocation11 + $0x8] sm:$0xf]
    %v364 = vld [vmem:[#allocation11 + $0xc] sm:$0xf]
    %v365 = vld [vmem:[#allocation11 + $0x10] sm:$0xf]
    %v366 = vld [vmem:[#allocation11 + $0x14] sm:$0xf]
    %v367 = vld [vmem:[#allocation11 + $0x18] sm:$0xf]
    %v368 = vld [vmem:[#allocation11 + $0x1c] sm:$0xf]
    %v369 = vld [vmem:[#allocation11 + $0x20] sm:$0xf]
    %v370 = vld [vmem:[#allocation11 + $0x24] sm:$0xf]
    %v371 = vld [vmem:[#allocation11 + $0x28] sm:$0xf]
    %v372 = vld [vmem:[#allocation11 + $0x2c] sm:$0xf]
    %v373 = vld [vmem:[#allocation11 + $0x30] sm:$0xf]
    %v374 = vld [vmem:[#allocation11 + $0x34] sm:$0xf]
    %v375 = vld [vmem:[#allocation11 + $0x38] sm:$0xf]
    %v376 = vld [vmem:[#allocation11 + $0x3c] sm:$0xf]
    %v377 = vld [vmem:[%s6] sm:$0x1]
    %v379 = vlaneseq
    %v380 = vshrl.u32 %v379, 7
    %v381 = vsub.s32 0, %v380
    %v382 = vrot.slane %v377, %v381
    %v400 = vunpack.c.l.b16 %v361
    %v401 = vunpack.c.l.b16 %v362
    %v402 = vunpack.c.l.b16 %v363
    %v403 = vunpack.c.l.b16 %v364
    %v404 = vunpack.c.l.b16 %v365
    %v405 = vunpack.c.l.b16 %v366
    %v406 = vunpack.c.l.b16 %v367
    %v407 = vunpack.c.l.b16 %v368
    %v408 = vunpack.c.l.b16 %v369
    %v409 = vunpack.c.l.b16 %v370
    %v410 = vunpack.c.l.b16 %v371
    %v411 = vunpack.c.l.b16 %v372
    %v412 = vunpack.c.l.b16 %v373
    %v413 = vunpack.c.l.b16 %v374
    %v414 = vunpack.c.l.b16 %v375
    %v415 = vunpack.c.l.b16 %v376
    %v416 = vpack.c.b16 %v401, %v400
    %v417 = vpack.c.b16 %v403, %v402
    %v418 = vpack.c.b16 %v405, %v404
    %v419 = vpack.c.b16 %v407, %v406
    %v420 = vpack.c.b16 %v409, %v408
    %v421 = vpack.c.b16 %v411, %v410
    %v422 = vpack.c.b16 %v413, %v412
    %v423 = vpack.c.b16 %v415, %v414
    %432 = vmatprep.subr.bf16.mxu0 0
    %433 = vmatpush1.bf16.msra.mxu0 %v416
    %434 = vmatprep.subr.bf16.mxu0 0
    %435 = vmatpush1.bf16.msra.mxu0 %v417
    %436 = vmatprep.subr.bf16.mxu0 0
    %437 = vmatpush1.bf16.msra.mxu0 %v418
    %438 = vmatprep.subr.bf16.mxu0 0
    %439 = vmatpush1.bf16.msra.mxu0 %v419
    %440 = vmatprep.subr.bf16.mxu0 0
    %441 = vmatpush1.bf16.msra.mxu0 %v420
    %442 = vmatprep.subr.bf16.mxu0 0
    %443 = vmatpush1.bf16.msra.mxu0 %v421
    %444 = vmatprep.subr.bf16.mxu0 0
    %445 = vmatpush1.bf16.msra.mxu0 %v422
    %446 = vmatprep.subr.bf16.mxu0 0
    %447 = vmatpush1.bf16.msra.mxu0 %v423
    %448 = vmatprep.subr.bf16.mxu0 0
    %449 = vmatpush1.bf16.msra.mxu0 0
    %450 = vmatprep.subr.bf16.mxu0 0
    %451 = vmatpush1.bf16.msra.mxu0 0
    %452 = vmatprep.subr.bf16.mxu0 0
    %453 = vmatpush1.bf16.msra.mxu0 0
    %454 = vmatprep.subr.bf16.mxu0 0
    %455 = vmatpush1.bf16.msra.mxu0 0
    %456 = vmatprep.subr.bf16.mxu0 0
    %457 = vmatpush1.bf16.msra.mxu0 0
    %458 = vmatprep.subr.bf16.mxu0 0
    %459 = vmatpush1.bf16.msra.mxu0 0
    %460 = vmatprep.subr.bf16.mxu0 0
    %461 = vmatpush1.bf16.msra.mxu0 0
    %462 = vmatprep.subr.bf16.mxu0 0
    %463 = vmatpush1.bf16.msra.mxu0 0
    %464 = vmatprep.mubr.bf16.mxu0 0
    %465 = vmatmul.mubr.bf16.gmra.mrb[0].mxu0 %v360
    %v466 = vpop.f32.mrb[0].mxu0
    %v467 = vadd.f32 %v382, %v466
    %v468 = vpop.f32.mrb[0].mxu0
    %v469 = vpop.f32.mrb[0].mxu0
    %v470 = vpop.f32.mrb[0].mxu0
    %471 = vdwg.mxu0
    %vm472 = vcmp.gt.f32.partialorder %v467, 0.0
    %v473 = vmul.f32 %v467, 0.01
    %v474 = vsel %vm472, %v467, %v473
    %v475 = vld [vmem:[%s7] sm:$0x1]
    %v477 = vlaneseq
    %v478 = vshrl.u32 %v477, 7
    %v479 = vsub.s32 0, %v478
    %v480 = vrot.slane %v475, %v479
    %v482 = vmul.f32 %v474, %v480
    %483 = vadd.xlane.f32.xlu0 %v482
    %v484 = vpop.xlane.xlu0 %483
    %s485 = sld [smem:[#allocation2]]
    %v486 = vstv %s485
    %v487 = vadd.f32 %v484, %v486
    %v488 = vxor.u32 %v487, 2147483648
    %v489 = vmul.f32 %v488, 1.442695
    %v490 = vpow.pop %v489
    %v491 = vadd.f32 %v490, 1.0
    %v492 = vrcp.pop %v491
    %v493 = vmul.f32 1.0, %v492
    %v495 = vlaneseq
    %v496 = vand.u32 %v495, 127
    %v497 = vlaneseq
    %v498 = vshrl.u32 %v497, 7
    %v499 = vsub.s32 %v496, %v498
    %v500 = vrot.slane %v493, %v499
    %vm502 = vcmask 57344
    %503 = vst.msk [vmem:[#allocation12] sm:$0x1] %vm502, %v500
    // Predicated region
    $region58: #{tpu_custom_call.1} parent=1 // pred_check
      _
    $region59: #{tpu_custom_call.1} parent=1 // pred_check_branch
      %505 = sbr.rel (0) target = $region61
    $region60: #{tpu_custom_call.1} parent=1 // pred_region
      %s507 = ssub.s32 16, 16
      %508 = vsyncadd [#allocation5], %s507
      %s510 = sshll.u32 [#allocation12], 4
      %s511 = int_to_ptr.vmem [resolvable:$true] %s510
      %513 = dma.vmem_to_hbm [thread:$0]  %s511, 16, %s9, [#allocation5]
    $region61: #{tpu_custom_call.1} parent=1 // pred_fallthru
      _
    // Predicated region
    $region62: #{tpu_custom_call.1} parent=1 // pred_check
      _
    $region63: #{tpu_custom_call.1} parent=1 // pred_check_branch
      %515 = sbr.rel (0) target = $region65
    $region64: #{tpu_custom_call.1} parent=1 // pred_region
      %516 = dma.done [#allocation5], 16
    $region65: #{tpu_custom_call.1} parent=1 // pred_fallthru
      _
    %517 = vsyncpa [#allocation4], 1
    %518 = vsyncpa [#allocation7], 1
    %519 = vsyncpa [#allocation10], 1
    %520 = vsyncpa [#allocation5], 1

</llo_original>
